<compile_context>
chip_gen: v6e
topology: v6e:2x2x1
jax: 0.10.0
libtpu: 0.0.40
codegen_flags: <defaults>
</compile_context>

<pallas_src>
import functools

import jax
import jax.numpy as jnp
from jax import lax
from jax.experimental import pallas as pl
from jax.experimental.pallas import tpu as pltpu

IGNORE_INDEX = -100  # torch.nn.CrossEntropyLoss default ignore_index


def _logits_kernel(x_ref, w_ref, b_ref, logits_ref):
    """Classifier only (labels=None path): (TN,H) @ (H,L) + bias."""
    logits = jnp.dot(x_ref[...], w_ref[...],
                     preferred_element_type=jnp.float32) + b_ref[...]
    logits_ref[...] = logits.astype(logits_ref.dtype)


def _head_kernel(x_ref, w_ref, b_ref, lab_ref, logits_ref, nll_ref, *,
                 n_tokens, tile_n, check_rows):
    # ---- classifier: (TN, H) @ (H, L) on the MXU, f32 accumulation ----
    logits = jnp.dot(x_ref[...], w_ref[...],
                     preferred_element_type=jnp.float32) + b_ref[...]  # [TN,L] f32
    logits_ref[...] = logits.astype(logits_ref.dtype)

    # ---- cross-entropy: only the log-prob at the target label is needed ----
    labels = lab_ref[...]                                          # [TN, 1] int32
    valid = labels != IGNORE_INDEX                                 # [TN, 1] bool
    if check_rows:  # static: only emitted for the ragged-tail case
        i = pl.program_id(0)
        row = i * tile_n + lax.broadcasted_iota(jnp.int32, labels.shape, 0)
        valid = valid & (row < n_tokens)

    m = jnp.max(logits, axis=-1, keepdims=True)                    # [TN, 1]
    z = logits - m
    lse = jnp.log(jnp.sum(jnp.exp(z), axis=-1, keepdims=True))     # [TN, 1]
    col = lax.broadcasted_iota(jnp.int32, logits.shape, 1)         # [TN, L]
    z_tgt = jnp.sum(jnp.where(col == labels, z, 0.0),
                    axis=-1, keepdims=True)                        # z at target
    nll = lse - z_tgt                                              # -log p[label]

    # Zero out ignored / out-of-bounds rows; the wrapper sums and divides.
    nll_ref[...] = jnp.where(valid, nll, 0.0)


def _pick_tile_n(n, h, itemsize, target, budget_bytes=8 << 20):
    """Largest tile <= target whose double-buffered x block fits the budget."""
    cap = max(8, budget_bytes // max(1, 2 * h * itemsize))
    tn = min(target, cap, n)
    if tn < n:                      # keep second-minor block dim a multiple of 8
        tn = max(8, (tn // 8) * 8)
    return int(tn)


@functools.partial(jax.jit, static_argnames=("tile_n",))
def token_classification_head(sequence_output, weight, bias=None, labels=None,
                              attention_mask=None, *, tile_n=1024):
    """sequence_output: [B, S, H] (any float dtype; NOT up-cast);
    weight: [L, H] (PyTorch layout); bias: [L] or None;
    labels: [B, S] int or None; attention_mask: [B, S] int or None.
    Returns (logits [B, S, L] in sequence_output dtype, loss [] f32 or None)."""
    B, S, H = sequence_output.shape
    L = weight.shape[0]
    N = B * S

    x2d = sequence_output.reshape(N, H)                 # no dtype up-cast
    w = weight.T.astype(x2d.dtype)                      # [H, L]; MXU dtype = act dtype
    if bias is None:
        b2d = jnp.zeros((1, L), jnp.float32)
    else:
        b2d = bias.reshape(1, L).astype(jnp.float32)

    TN = _pick_tile_n(N, H, x2d.dtype.itemsize, tile_n)
    grid = (pl.cdiv(N, TN),)
    out_dt = sequence_output.dtype
    itemsz = x2d.dtype.itemsize
    out_itemsz = jnp.dtype(out_dt).itemsize

    x_spec = pl.BlockSpec((TN, H), lambda i: (i, 0))        # streamed activations
    w_spec = pl.BlockSpec((H, L), lambda i: (0, 0))         # resident weight
    b_spec = pl.BlockSpec((1, L), lambda i: (0, 0))         # resident bias
    logits_spec = pl.BlockSpec((TN, L), lambda i: (i, 0))

    est = (2 * TN * H * itemsz                              # x double buffer
           + 2 * TN * L * out_itemsz                        # logits double buffer
           + 2 * TN * 4 * 2                                 # labels + nll columns
           + H * L * itemsz + 4 * L)                        # resident weight + bias
    vmem_limit = int(min(max(2 * est + (2 << 20), 8 << 20), 64 << 20))
    cparams = pltpu.CompilerParams(
        dimension_semantics=("parallel",), vmem_limit_bytes=vmem_limit)

    if labels is None:
        cost = pl.CostEstimate(
            flops=2 * N * H * L, transcendentals=0,
            bytes_accessed=N * H * itemsz + H * L * itemsz + N * L * out_itemsz)
        logits2d = pl.pallas_call(
            _logits_kernel,
            out_shape=jax.ShapeDtypeStruct((N, L), out_dt),
            grid=grid,
            in_specs=[x_spec, w_spec, b_spec],
            out_specs=logits_spec,
            compiler_params=cparams,
            cost_estimate=cost,
        )(x2d, w, b2d)
        return logits2d.reshape(B, S, L), None

    lab = labels.reshape(N, 1).astype(jnp.int32)
    if attention_mask is not None:
        mask = attention_mask.reshape(N, 1).astype(jnp.int32)
        lab = jnp.where(mask == 1, lab, IGNORE_INDEX)       # single int32 stream

    check_rows = (N % TN) != 0
    cost = pl.CostEstimate(
        flops=2 * N * H * L,
        transcendentals=N * L + N,
        bytes_accessed=(N * H * itemsz + H * L * itemsz
                        + N * L * out_itemsz + N * 4 + N * 4))

    logits2d, nll = pl.pallas_call(
        functools.partial(_head_kernel, n_tokens=N, tile_n=TN,
                          check_rows=check_rows),
        out_shape=(jax.ShapeDtypeStruct((N, L), out_dt),
                   jax.ShapeDtypeStruct((N, 1), jnp.float32)),
        grid=grid,
        in_specs=[x_spec, w_spec, b_spec,
                  pl.BlockSpec((TN, 1), lambda i: (i, 0))],  # merged labels
        out_specs=(logits_spec,
                   pl.BlockSpec((TN, 1), lambda i: (i, 0))),
        compiler_params=cparams,
        cost_estimate=cost,
    )(x2d, w, b2d, lab)

    num_valid = jnp.sum((lab != IGNORE_INDEX).astype(jnp.float32))
    # Guarded divide: all-tokens-masked -> 0.0 (torch would return NaN).
    loss = jnp.sum(nll) / jnp.maximum(num_valid, 1.0)
    return logits2d.reshape(B, S, L), loss


if __name__ == "__main__":
    # Small shapes consistent with the module's forward.
    B, S, H, L = 2, 8, 32, 5

    key = jax.random.PRNGKey(0)
    k_x, k_w, k_lab, k_mask = jax.random.split(key, 4)

    # bf16 activations exercise the intended hot path (wrapper is dtype pass-through).
    sequence_output = jax.random.normal(k_x, (B, S, H), jnp.float32).astype(jnp.bfloat16)
    pooled_output = jax.random.normal(k_x, (B, H), jnp.float32)  # unused by forward

    # _init_weights(): classifier.weight ~ N(0, 0.02), shape [L, H]; default bias=None
    # (nn.Linear(..., bias=None) builds a bias-free layer).
    weight = 0.02 * jax.random.normal(k_w, (L, H), dtype=jnp.float32)
    bias = None

    labels = jax.random.randint(k_lab, (B, S), 0, L, dtype=jnp.int32)
    attention_mask = (jax.random.uniform(k_mask, (B, S)) > 0.25).astype(jnp.int32)

    logits, loss = token_classification_head(
        sequence_output, weight, bias, labels, attention_mask)
    jax.block_until_ready((logits, loss))

    assert logits.shape == (B, S, L)
    assert loss.shape == ()
    assert bool(jnp.isfinite(loss))

    # labels=None path: loss is None, logits identical to the loss path.
    logits_nl, loss_nl = token_classification_head(sequence_output, weight, bias)
    jax.block_until_ready(logits_nl)
    assert loss_nl is None
    assert jnp.allclose(logits_nl.astype(jnp.float32), logits.astype(jnp.float32))

    # Pure-JAX reference (same precision path: native-dtype matmul, f32 loss math).
    x2d = sequence_output.reshape(-1, H)
    w_t = weight.T.astype(x2d.dtype)
    ref_logits_f32 = jnp.dot(x2d, w_t, preferred_element_type=jnp.float32)
    ref_logits = ref_logits_f32.astype(sequence_output.dtype).reshape(B, S, L)
    merged = jnp.where(attention_mask.reshape(-1) == 1,
                       labels.reshape(-1), IGNORE_INDEX)
    valid = merged != IGNORE_INDEX
    logp = jax.nn.log_softmax(ref_logits_f32, axis=-1)
    nll_ref = -jnp.take_along_axis(
        logp, jnp.clip(merged, 0, L - 1)[:, None], axis=-1)[:, 0]
    ref_loss = jnp.sum(jnp.where(valid, nll_ref, 0.0)) / jnp.maximum(
        jnp.sum(valid.astype(jnp.float32)), 1.0)

    assert jnp.allclose(logits.astype(jnp.float32),
                        ref_logits.astype(jnp.float32), atol=2e-2, rtol=2e-2)
    assert jnp.allclose(loss, ref_loss, atol=2e-2, rtol=2e-2)
    print("KERNEL_OK")
</pallas_src>

<mosaic_0001>
module attributes {stable_mosaic.version = 11 : i64} {
  func.func @_head_kernel(%arg0: i32, %arg1: memref<16x32xbf16, #tpu.memory_space<vmem>>, %arg2: memref<32x5xbf16, #tpu.memory_space<vmem>>, %arg3: memref<1x5xf32, #tpu.memory_space<vmem>>, %arg4: memref<16x1xi32, #tpu.memory_space<vmem>>, %arg5: memref<16x5xbf16, #tpu.memory_space<vmem>>, %arg6: memref<16x1xf32, #tpu.memory_space<vmem>>) attributes {dimension_semantics = [#tpu.dimension_semantics<parallel>], iteration_bounds = array<i64: 1>, scalar_prefetch = 0 : i64, scratch_operands = 0 : i64, tpu.core_type = #tpu.core_type<tc>, window_params = [{transform_indices = @transform_0, window_bounds = array<i64: 16, 32>}, {pipeline_mode = #tpu.pipeline_mode<synchronous>, transform_indices = @transform_1, window_bounds = array<i64: 32, 5>}, {pipeline_mode = #tpu.pipeline_mode<synchronous>, transform_indices = @transform_2, window_bounds = array<i64: 1, 5>}, {transform_indices = @transform_3, window_bounds = array<i64: 16, 1>}, {transform_indices = @transform_4, window_bounds = array<i64: 16, 5>}, {transform_indices = @transform_5, window_bounds = array<i64: 16, 1>}]} {
    %c0 = arith.constant 0 : index
    %c0_0 = arith.constant 0 : index
    %0 = vector.load %arg1[%c0, %c0_0] : memref<16x32xbf16, #tpu.memory_space<vmem>>, vector<16x32xbf16>
    %c0_1 = arith.constant 0 : index
    %c0_2 = arith.constant 0 : index
    %1 = vector.load %arg2[%c0_1, %c0_2] : memref<32x5xbf16, #tpu.memory_space<vmem>>, vector<32x5xbf16>
    %cst = arith.constant dense<0.000000e+00> : vector<16x5xf32>
    %2 = tpu.matmul %0, %1, %cst {dimension_numbers = #tpu.dot_dimension_numbers<[1], [0], [0], [1], [0, 0, 1, 1], [], []>} : vector<16x32xbf16>, vector<32x5xbf16>, vector<16x5xf32> -> vector<16x5xf32>
    %c0_3 = arith.constant 0 : index
    %c0_4 = arith.constant 0 : index
    %3 = vector.load %arg3[%c0_3, %c0_4] : memref<1x5xf32, #tpu.memory_space<vmem>>, vector<1x5xf32>
    %4 = vector.broadcast %3 : vector<1x5xf32> to vector<16x5xf32>
    %5 = arith.addf %2, %4 : vector<16x5xf32>
    %6 = arith.truncf %5 : vector<16x5xf32> to vector<16x5xbf16>
    %c0_5 = arith.constant 0 : index
    %c0_6 = arith.constant 0 : index
    %7 = vector.load %arg5[%c0_5, %c0_6] : memref<16x5xbf16, #tpu.memory_space<vmem>>, vector<16x5xbf16>
    tpu.vector_store %arg5[%c0_5, %c0_6], %6 {strides = array<i32>} : memref<16x5xbf16, #tpu.memory_space<vmem>>, vector<16x5xbf16>,
    %c0_7 = arith.constant 0 : index
    %c0_8 = arith.constant 0 : index
    %8 = vector.load %arg4[%c0_7, %c0_8] : memref<16x1xi32, #tpu.memory_space<vmem>>, vector<16x1xi32>
    %c-100_i32 = arith.constant -100 : i32
    %9 = vector.broadcast %c-100_i32 : i32 to vector<16x1xi32>
    %10 = arith.cmpi ne, %8, %9 : vector<16x1xi32>
    %cst_9 = arith.constant dense<0xFF800000> : vector<16xf32>
    %11 = vector.multi_reduction <maximumf>, %5, %cst_9 [1] : vector<16x5xf32> to vector<16xf32>
    %12 = vector.shape_cast %11 : vector<16xf32> to vector<16x1xf32>
    %13 = vector.broadcast %12 : vector<16x1xf32> to vector<16x5xf32>
    %14 = arith.subf %5, %13 : vector<16x5xf32>
    %15 = math.exp %14 : vector<16x5xf32>
    %cst_10 = arith.constant dense<0.000000e+00> : vector<16xf32>
    %16 = vector.multi_reduction <add>, %15, %cst_10 [1] : vector<16x5xf32> to vector<16xf32>
    %17 = vector.shape_cast %16 : vector<16xf32> to vector<16x1xf32>
    %18 = math.log %17 : vector<16x1xf32>
    %19 = tpu.iota {dimensions = array<i32: 1>} : vector<16x5xi32>
    %20 = vector.broadcast %8 : vector<16x1xi32> to vector<16x5xi32>
    %21 = arith.cmpi eq, %19, %20 : vector<16x5xi32>
    %cst_11 = arith.constant 0.000000e+00 : f32
    %22 = vector.broadcast %cst_11 : f32 to vector<16x5xf32>
    %23 = arith.select %21, %14, %22 : vector<16x5xi1>, vector<16x5xf32>
    %cst_12 = arith.constant dense<0.000000e+00> : vector<16xf32>
    %24 = vector.multi_reduction <add>, %23, %cst_12 [1] : vector<16x5xf32> to vector<16xf32>
    %25 = vector.shape_cast %24 : vector<16xf32> to vector<16x1xf32>
    %26 = arith.subf %18, %25 : vector<16x1xf32>
    %cst_13 = arith.constant 0.000000e+00 : f32
    %27 = vector.broadcast %cst_13 : f32 to vector<16x1xf32>
    %28 = arith.select %10, %26, %27 : vector<16x1xi1>, vector<16x1xf32>
    %c0_14 = arith.constant 0 : index
    %c0_15 = arith.constant 0 : index
    %29 = vector.load %arg6[%c0_14, %c0_15] : memref<16x1xf32, #tpu.memory_space<vmem>>, vector<16x1xf32>
    tpu.vector_store %arg6[%c0_14, %c0_15], %28 {strides = array<i32>} : memref<16x1xf32, #tpu.memory_space<vmem>>, vector<16x1xf32>,
    return
  }
  func.func @transform_0(%arg0: i32) -> (i32, i32) {
    %c0_i32 = arith.constant 0 : i32
    %c0_i32_0 = arith.constant 0 : i32
    return %arg0, %c0_i32 : i32, i32
  }
  func.func @transform_1(%arg0: i32) -> (i32, i32) {
    %c0_i32 = arith.constant 0 : i32
    %c0_i32_0 = arith.constant 0 : i32
    %c0_i32_1 = arith.constant 0 : i32
    return %c0_i32, %c0_i32_0 : i32, i32
  }
  func.func @transform_2(%arg0: i32) -> (i32, i32) {
    %c0_i32 = arith.constant 0 : i32
    %c0_i32_0 = arith.constant 0 : i32
    %c0_i32_1 = arith.constant 0 : i32
    return %c0_i32, %c0_i32_0 : i32, i32
  }
  func.func @transform_3(%arg0: i32) -> (i32, i32) {
    %c0_i32 = arith.constant 0 : i32
    %c0_i32_0 = arith.constant 0 : i32
    return %arg0, %c0_i32 : i32, i32
  }
  func.func @transform_4(%arg0: i32) -> (i32, i32) {
    %c0_i32 = arith.constant 0 : i32
    %c0_i32_0 = arith.constant 0 : i32
    return %arg0, %c0_i32 : i32, i32
  }
  func.func @transform_5(%arg0: i32) -> (i32, i32) {
    %c0_i32 = arith.constant 0 : i32
    %c0_i32_0 = arith.constant 0 : i32
    return %arg0, %c0_i32 : i32, i32
  }
}

</mosaic_0001>

<llo_original>
// kernel: token_classification_head.1
$region0: #{token_classification_head.1}
  #allocation0 [shape = 'u32[]', space=smem, size = 0x4, offset = 0x4, fixed_abs, tag = 'smem constant byte address 0x4 - core index']
  #allocation1 [shape = 'u32[144,128]{1,0:T(1,128)}', space=vmem, size = 0x12000, scoped, tag = 'internal scratch']
  %s0 = inlined_call_operand.vmem [shape: bf16[16,32], index: 0, kind: input, shape index: {}]
  %s1 = inlined_call_operand.vmem [shape: bf16[32,5], index: 1, kind: input, shape index: {}]
  %s2 = inlined_call_operand.vmem [shape: f32[1,5], index: 2, kind: input, shape index: {}]
  %s3 = inlined_call_operand.vmem [shape: s32[16,1], index: 3, kind: input, shape index: {}]
  %s4 = inlined_call_operand.vmem [shape: bf16[16,5], index: 4, kind: output, shape index: {0}]
  %s5 = inlined_call_operand.vmem [shape: f32[16,1], index: 5, kind: output, shape index: {1}]
  %6 = xla_tuple %s4, %s5
  %s7 = sld [smem:[#allocation0]]
  $region34: #{token_classification_head.1} parent=0
    _
  %s9 = ssub.s32 1, %s7
  %s10 = scalar_select 0, %s9, %s7
  // Predicated region
  $region2: #{token_classification_head.1} parent=0 // pred_check
    _
  $region3: #{token_classification_head.1} parent=0 // pred_check_branch
    %12 = sbr.rel (0) target = $region5
  $region4: #{token_classification_head.1} parent=0 // pred_region
    _
  $region5: #{token_classification_head.1} parent=0 // pred_fallthru
    _
  // Predicated region
  $region6: #{token_classification_head.1} parent=0 // pred_check
    _
  $region7: #{token_classification_head.1} parent=0 // pred_check_branch
    %14 = sbr.rel (0) target = $region9
  $region8: #{token_classification_head.1} parent=0 // pred_region
    _
  $region9: #{token_classification_head.1} parent=0 // pred_fallthru
    _
  // Predicated region
  $region10: #{token_classification_head.1} parent=0 // pred_check
    _
  $region11: #{token_classification_head.1} parent=0 // pred_check_branch
    %16 = sbr.rel (0) target = $region13
  $region12: #{token_classification_head.1} parent=0 // pred_region
    _
  $region13: #{token_classification_head.1} parent=0 // pred_fallthru
    _
  // Predicated region
  $region14: #{token_classification_head.1} parent=0 // pred_check
    _
  $region15: #{token_classification_head.1} parent=0 // pred_check_branch
    %18 = sbr.rel (0) target = $region17
  $region16: #{token_classification_head.1} parent=0 // pred_region
    _
  $region17: #{token_classification_head.1} parent=0 // pred_fallthru
    _
  %v20 = vld [vmem:[%s0] sm:$0xf]
  %v21 = vld [vmem:[%s0 + $0x4] sm:$0xf]
  %v22 = vld [vmem:[%s1] sm:$0xf]
  %v23 = vld [vmem:[%s1 + $0x4] sm:$0xf]
  %v24 = vld [vmem:[%s1 + $0x8] sm:$0xf]
  %v25 = vld [vmem:[%s1 + $0xc] sm:$0xf]
  %v26 = vld [vmem:[%s2] sm:$0x1]
  %v28 = vlaneseq
  %v29 = vshrl.u32 %v28, 7
  %v30 = vsub.s32 0, %v29
  %v31 = vrot.slane %v26, %v30
  %v35 = vunpack.c.l.b16 %v20
  %v36 = vunpack.c.l.b16 %v21
  %v37 = vpack.c.b16 %v36, %v35
  %v42 = vunpack.c.l.b16 %v22
  %v43 = vunpack.c.l.b16 %v23
  %v44 = vunpack.c.l.b16 %v24
  %v45 = vunpack.c.l.b16 %v25
  %v46 = vpack.c.b16 %v43, %v42
  %v47 = vpack.c.b16 %v45, %v44
  %vm50 = vcmask 261120
  %v52 = vsel %vm50, %v37, 0
  %54 = vmatprep.subr.bf16.mxu0 0
  %55 = vmatpush1.bf16.msra.mxu0 0
  %56 = vmatprep.subr.bf16.mxu0 0
  %57 = vmatpush1.bf16.msra.mxu0 0
  %58 = vmatprep.subr.bf16.mxu0 0
  %59 = vmatpush1.bf16.msra.mxu0 0
  %60 = vmatprep.subr.bf16.mxu0 0
  %61 = vmatpush1.bf16.msra.mxu0 0
  %62 = vmatprep.subr.bf16.mxu0 0
  %63 = vmatpush1.bf16.msra.mxu0 0
  %64 = vmatprep.subr.bf16.mxu0 0
  %65 = vmatpush1.bf16.msra.mxu0 0
  %66 = vmatprep.subr.bf16.mxu0 0
  %67 = vmatpush1.bf16.msra.mxu0 %v47
  %68 = vmatprep.subr.bf16.mxu0 0
  %69 = vmatpush1.bf16.msra.mxu0 %v46
  %70 = vmatprep.subr.bf16.mxu0 0
  %71 = vmatpush2.bf16.msra.mxu0 0
  %72 = vmatprep.subr.bf16.mxu0 0
  %73 = vmatpush2.bf16.msra.mxu0 0
  %74 = vmatprep.subr.bf16.mxu0 0
  %75 = vmatpush2.bf16.msra.mxu0 0
  %76 = vmatprep.subr.bf16.mxu0 0
  %77 = vmatpush2.bf16.msra.mxu0 0
  %78 = vmatprep.subr.bf16.mxu0 0
  %79 = vmatpush2.bf16.msra.mxu0 0
  %80 = vmatprep.subr.bf16.mxu0 0
  %81 = vmatpush2.bf16.msra.mxu0 0
  %82 = vmatprep.subr.bf16.mxu0 0
  %83 = vmatpush2.bf16.msra.mxu0 0
  %84 = vmatprep.subr.bf16.mxu0 0
  %85 = vmatpush2.bf16.msra.mxu0 0
  %86 = vmatprep.mubr.bf16.mxu0 0
  %87 = vmatmul.mubr.bf16.gmra.mxu0 %v52
  %v88 = vpop.f32.mrf.mxu0
  %v89 = vadd.f32 %v31, %v88
  %v90 = vpop.f32.mrf.mxu0
  %v91 = vpop.f32.mrf.mxu0
  %v92 = vadd.f32 %v31, %v91
  %v93 = vpop.f32.mrf.mxu0
  %94 = vdwg.mxu0
  %v95 = vpack.c.bf16 %v92, %v89
  %v97 = vunpack.c.l.b16 %v95
  %v98 = vunpack.c.h.b16 %v95
  %v99 = vpack.c.b16 %v97, %v97
  %v100 = vpack.c.b16 %v98, %v98
  %vm103 = vcmask 35840
  %104 = vst.msk [vmem:[%s4] sm:$0xf] %vm103, %v99
  %105 = vst.msk [vmem:[%s4 + $0x4] sm:$0xf] %vm103, %v100
  %v106 = vld [vmem:[%s3] sm:$0xff]
  %v107 = vld [vmem:[%s3 + $0x8] sm:$0xff]
  %vm108 = vcmp.ne.s32.totalorder %v106, 4294967196
  %vm109 = vcmp.ne.s32.totalorder %v107, 4294967196
  %vm110 = vcmask 39936
  %v111 = vsel %vm110, %v89, -inf
  %112 = vmax.xlane.f32.xlu0 %v111
  %v113 = vpop.xlane.xlu0 %112
  %v114 = vsel %vm110, %v92, -inf
  %115 = vmax.xlane.f32.xlu0 %v114
  %v116 = vpop.xlane.xlu0 %115
  %v117 = vsub.f32 %v89, %v113
  %v118 = vsub.f32 %v92, %v116
  %v119 = vmul.f32 %v117, 1.442695
  %v120 = vpow.pop %v119
  %v121 = vmul.f32 %v118, 1.442695
  %v122 = vpow.pop %v121
  %v123 = vsel %vm110, %v120, 0.0
  %124 = vadd.xlane.f32.xlu0 %v123
  %v125 = vpop.xlane.xlu0 %124
  %v126 = vsel %vm110, %v122, 0.0
  %127 = vadd.xlane.f32.xlu0 %v126
  %v128 = vpop.xlane.xlu0 %127
  %v129 = vlog2.pop %v125
  %v130 = vmul.f32 %v129, 0.6931472
  %v131 = vlog2.pop %v128
  %v132 = vmul.f32 %v131, 0.6931472
  %v133 = vlaneseq
  %v134 = vand.u32 %v133, 127
  %135 = vset.pattern.permute.xlu0 0
  %136 = vperm.xlu0 %135, %v106
  %v137 = vpop.permute.xlu0 %136
  %138 = vset.pattern.permute.xlu0 0
  %139 = vperm.xlu0 %138, %v107
  %v140 = vpop.permute.xlu0 %139
  %vm141 = vcmp.eq.s32.totalorder %v134, %v137
  %vm142 = vcmp.eq.s32.totalorder %v134, %v140
  %v143 = vsel %vm141, %v117, 0.0
  %v144 = vsel %vm142, %v118, 0.0
  %v145 = vsel %vm110, %v143, 0.0
  %146 = vadd.xlane.f32.xlu0 %v145
  %v147 = vpop.xlane.xlu0 %146
  %v148 = vsel %vm110, %v144, 0.0
  %149 = vadd.xlane.f32.xlu0 %v148
  %v150 = vpop.xlane.xlu0 %149
  %v151 = vsub.f32 %v130, %v147
  %v152 = vsub.f32 %v132, %v150
  %v153 = vsel %vm108, %v151, 0.0
  %v154 = vsel %vm109, %v152, 0.0
  %vm155 = vcmask 7168
  %156 = vst.msk [vmem:[%s5] sm:$0xff] %vm155, %v153
  %157 = vst.msk [vmem:[%s5 + $0x8] sm:$0xff] %vm155, %v154
  // Predicated region
  $region18: #{token_classification_head.1} parent=0 // pred_check
    _
  $region19: #{token_classification_head.1} parent=0 // pred_check_branch
    %159 = sbr.rel (0) target = $region21
  $region20: #{token_classification_head.1} parent=0 // pred_region
    _
  $region21: #{token_classification_head.1} parent=0 // pred_fallthru
    _
  // Predicated region
  $region22: #{token_classification_head.1} parent=0 // pred_check
    _
  $region23: #{token_classification_head.1} parent=0 // pred_check_branch
    %161 = sbr.rel (0) target = $region25
  $region24: #{token_classification_head.1} parent=0 // pred_region
    _
  $region25: #{token_classification_head.1} parent=0 // pred_fallthru
    _
  // Predicated region
  $region26: #{token_classification_head.1} parent=0 // pred_check
    _
  $region27: #{token_classification_head.1} parent=0 // pred_check_branch
    %163 = sbr.rel (0) target = $region29
  $region28: #{token_classification_head.1} parent=0 // pred_region
    _
  $region29: #{token_classification_head.1} parent=0 // pred_fallthru
    _
  // Predicated region
  $region30: #{token_classification_head.1} parent=0 // pred_check
    _
  $region31: #{token_classification_head.1} parent=0 // pred_check_branch
    %165 = sbr.rel (0) target = $region33
  $region32: #{token_classification_head.1} parent=0 // pred_region
    _
  $region33: #{token_classification_head.1} parent=0 // pred_fallthru
    _

</llo_original>
